<compile_context>
chip_gen: v7x
topology: tpu7x:2x2x1
jax: 0.10.0
libtpu: 0.0.40
codegen_flags: <defaults>
</compile_context>

<pallas_src>
import jax
import jax.numpy as jnp
from jax.experimental import pallas as pl
from jax.experimental.pallas import tpu as pltpu


# ---------------------------------------------------------------------------
# Path 1: direct HBM->HBM DMA copy (no VMEM staging).
# ---------------------------------------------------------------------------
def _dma_copy_kernel(x_hbm_ref, o_hbm_ref, sem):
    cp = pltpu.make_async_copy(x_hbm_ref, o_hbm_ref, sem)
    cp.start()
    cp.wait()


def _dma_identity_copy(x: jax.Array) -> jax.Array:
    """Bit-exact identity copy via a single HBM->HBM async DMA."""
    return pl.pallas_call(
        _dma_copy_kernel,
        out_shape=jax.ShapeDtypeStruct(x.shape, x.dtype),
        in_specs=[pl.BlockSpec(memory_space=pl.ANY)],
        out_specs=pl.BlockSpec(memory_space=pl.ANY),
        scratch_shapes=[pltpu.SemaphoreType.DMA(())],
    )(x)


# ---------------------------------------------------------------------------
# Path 2: tiled, lane-dense VMEM-staged copy (auto-pipelined BlockSpec grid).
# ---------------------------------------------------------------------------
def _copy_block_kernel(x_ref, o_ref):
    o_ref[...] = x_ref[...]


def _tiled_identity_copy(x: jax.Array, max_tile_rows: int = 512) -> jax.Array:
    """Identity copy through a lane-dense tiled Pallas grid.

    Wrapper-side padding guarantees an unmasked full-width vst path
    (last dim a multiple of 128, rows a multiple of the dtype sublane count);
    the pad is sliced off afterwards.
    """
    orig_shape = x.shape
    flat = x.reshape(-1)
    total = flat.size
    itemsize = jnp.dtype(x.dtype).itemsize
    sub = max(8, 32 // itemsize)  # sublane multiple: 8 f32, 16 bf16, 32 int8

    # Pick the widest lane dim (multiple of 128) that tiles the tensor exactly;
    # fall back to 128 (padding below makes any size legal).
    lanes = 128
    for cand in (4096, 2048, 1024, 512, 256):
        if total % (cand * sub) == 0:
            lanes = cand
            break

    rows = -(-total // lanes)              # ceil-div
    rows = -(-rows // sub) * sub           # round rows up to sublane multiple
    tile_rows = min(max_tile_rows, rows)   # both are multiples of `sub`
    rows = -(-rows // tile_rows) * tile_rows  # no partial last block
    padded_total = rows * lanes
    if padded_total != total:
        flat = jnp.pad(flat, (0, padded_total - total))
    slab = flat.reshape(rows, lanes)

    out = pl.pallas_call(
        _copy_block_kernel,
        out_shape=jax.ShapeDtypeStruct((rows, lanes), x.dtype),
        grid=(rows // tile_rows,),
        in_specs=[pl.BlockSpec((tile_rows, lanes), lambda i: (i, 0))],
        out_specs=pl.BlockSpec((tile_rows, lanes), lambda i: (i, 0)),
        compiler_params=pltpu.CompilerParams(
            dimension_semantics=("parallel",)),
    )(slab)
    return out.reshape(-1)[:total].reshape(orig_shape)


# ---------------------------------------------------------------------------
# The module itself.
# ---------------------------------------------------------------------------
class MIDITransformer:
    """JAX/Pallas port of the (empty) PyTorch MIDITransformer."""

    def __init__(self):
        # Reference __init__ defines no parameters.
        pass

    def forward(self, x):
        # TODO(synk): reference forward body is `pass` — it performs no
        # computation and returns None, so no Pallas kernel is launched here.
        return None

    __call__ = forward


if __name__ == "__main__":
    key = jax.random.PRNGKey(0)
    # Small MIDI-like sequence input: batch=2, seq=8, hidden=32.
    x = jax.random.normal(key, (2, 8, 32), dtype=jnp.float32)

    # Smoke test 1: direct HBM->HBM DMA copy.
    y_dma = _dma_identity_copy(x)
    jax.block_until_ready(y_dma)
    assert y_dma.shape == x.shape and y_dma.dtype == x.dtype
    assert bool(jnp.array_equal(y_dma, x))

    # Smoke test 2: tiled lane-dense VMEM-staged copy (padding path exercised:
    # 2*8*32 = 512 elements -> padded to an (8, 128) slab, pad sliced off).
    y_tiled = _tiled_identity_copy(x)
    jax.block_until_ready(y_tiled)
    assert y_tiled.shape == x.shape and y_tiled.dtype == x.dtype
    assert bool(jnp.array_equal(y_tiled, x))

    # Module forward matches the PyTorch module exactly: returns None,
    # launches nothing, syncs nothing.
    model = MIDITransformer()
    out = model(x)
    assert out is None

    print("KERNEL_OK")
</pallas_src>

<mosaic_0001>
module attributes {stable_mosaic.version = 11 : i64} {
  func.func @_dma_copy_kernel(%arg0: memref<2x8x32xf32, #tpu.memory_space<any>>, %arg1: memref<2x8x32xf32, #tpu.memory_space<any>>, %arg2: memref<!tpu.dma_semaphore, #tpu.memory_space<semaphore_mem>>) attributes {dimension_semantics = [], scalar_prefetch = 0 : i64, scratch_operands = 1 : i64, tpu.core_type = #tpu.core_type<tc>} {
    tpu.enqueue_dma source(%arg0 : memref<2x8x32xf32, #tpu.memory_space<any>>) target(%arg1 : memref<2x8x32xf32, #tpu.memory_space<any>>) target_semaphore(%arg2 : memref<!tpu.dma_semaphore, #tpu.memory_space<semaphore_mem>>)
    tpu.wait_dma2 semaphore(%arg2 : memref<!tpu.dma_semaphore, #tpu.memory_space<semaphore_mem>>) src(%arg0 : memref<2x8x32xf32, #tpu.memory_space<any>>) dst(%arg1 : memref<2x8x32xf32, #tpu.memory_space<any>>)
    return
  }
}

</mosaic_0001>

<llo_original>
// kernel: tpu_custom_call.1
$region0: #{tpu_custom_call.1}
  #allocation0 [shape = 'u32[]', space=smem, size = 0x4, offset = 0x4, fixed_abs, tag = 'smem constant byte address 0x4 - core index']
  #allocation1 [shape = 'u32[144,128]{1,0:T(1,128)}', space=vmem, size = 0x12000, scoped, tag = 'internal scratch']
  #allocation2 [shape = 's32[1]{0}', space=sflag, size = 0x4, scoped, tag = 'scratch operand']
  #allocation3 [shape = 's32[]', space=sflag, size = 0x4, offset = 0, fixed_abs, tag = 'sflag constant byte address 0x0 - dummy sync flag']
  #allocation4 [shape = 'u32[0]{0}', space=smem, size = 0, offset = 0, fixed_abs, tag = 'smem constant byte address 0x0 - null']
  %s0 = inlined_call_operand.hbm [shape: f32[2,8,32], index: 0, kind: input, shape index: {}]
  %s1 = inlined_call_operand.hbm [shape: f32[2,8,32], index: 1, kind: output, shape index: {}]
  %s2 = sld [smem:[#allocation0]]
  $region2: #{tpu_custom_call.1} parent=0
    _
  %s4 = ssub.s32 1, %s2
  %s5 = scalar_select 0, %s4, %s2
  %s7 = sshll.u32 1, 14
  %s8 = sxor.u32 4294967295, %s7
  %s11 = sshll.u32 3, 24
  %s12 = sxor.u32 4294967295, %s11
  %s13 = sand.u32 0, %s12
  %s15 = sor.u32 %s13, 0
  %18 = dma.general %s0, 256, %s1, [#allocation2], [#allocation3], [#allocation4], %s15, 0
  %s19 = smul.u32 2, 8
  %s20 = smul.u32 %s19, 1
  %s21 = sshll.u32 %s20, 4
  %22 = dma.done [#allocation2], %s21
  %23 = vsyncmov [#allocation2]
  %s24 = vpop.sfrf %23
  %p25 = scmp.eq.s32.totalorder %s24, 0
  %p26 = pneg %p25
  %28 = shalt.err (%p26)

</llo_original>
